<compile_context>
chip_gen: v7x
topology: tpu7x:2x2x1
jax: 0.10.0
libtpu: 0.0.40
codegen_flags: <defaults>
</compile_context>

<pallas_src>
import jax
import jax.numpy as jnp
from jax.experimental import pallas as pl
from jax.experimental.pallas import tpu as pltpu

_LANES = 512                            # lane width: multiple of 128
_TARGET_BLOCK_BYTES = 2 * 1024 * 1024   # ~2 MiB per input block


def _sublanes_for(dtype) -> int:
    # f32 -> 8, bf16 -> 16, int8/fp8 -> 32: sub-32-bit dtypes pack along sublanes.
    itemsize = jnp.dtype(dtype).itemsize
    return 8 * max(1, 4 // itemsize)


def _make_lambda_kernel(f):
    def kernel(x_ref, o_ref):
        # Elementwise hot path: load tile, apply f, store tile.
        o_ref[...] = f(x_ref[...]).astype(o_ref.dtype)
    return kernel


def _apply_lambda_2d(f, x2d, out_dtype, tile_rows):
    """Apply elementwise f to a lane-dense 2-D slab via a tiled pallas_call."""
    rows, lanes = x2d.shape
    return pl.pallas_call(
        _make_lambda_kernel(f),
        out_shape=jax.ShapeDtypeStruct((rows, lanes), out_dtype),
        grid=(rows // tile_rows,),
        in_specs=[pl.BlockSpec((tile_rows, lanes), lambda i: (i, 0))],
        out_specs=pl.BlockSpec((tile_rows, lanes), lambda i: (i, 0)),
        compiler_params=pltpu.CompilerParams(
            dimension_semantics=("parallel",)),
    )(x2d)


class Lambda:
    """Pallas equivalent of the PyTorch Lambda(nn.Module): forward(x) = f(x)."""

    def __init__(self, f):
        self.f = f

    def __call__(self, x):
        return self.forward(x)

    def forward(self, x):
        # Output dtype follows f (PyTorch Lambda returns f(x) as-is, no cast
        # back to the input dtype).
        out_aval = jax.eval_shape(self.f, jax.ShapeDtypeStruct(x.shape, x.dtype))
        if tuple(out_aval.shape) != tuple(x.shape):
            # TODO(synk): shape-changing f has no generic single-kernel tiling.
            raise ValueError(
                "Pallas Lambda supports only shape-preserving elementwise f; "
                f"got {tuple(x.shape)} -> {tuple(out_aval.shape)}")
        out_dtype = out_aval.dtype

        n = x.size
        lanes = _LANES
        sub = _sublanes_for(x.dtype)
        itemsize = jnp.dtype(x.dtype).itemsize

        # ~2 MiB input blocks, rows rounded to the dtype sublane count.
        target_rows = max(
            sub, (_TARGET_BLOCK_BYTES // (lanes * itemsize)) // sub * sub)

        # Rows needed to cover n elements at `lanes` per row (multiple of sub).
        rows_needed = pl.cdiv(pl.cdiv(n, lanes), sub) * sub
        tile_rows = min(target_rows, rows_needed)
        # Keep the grid >= 2 steps when there is enough data so both v7x
        # TensorCores get work.
        if tile_rows == rows_needed and rows_needed >= 2 * sub:
            tile_rows = max(sub, (rows_needed // 2) // sub * sub)
        rows = pl.cdiv(rows_needed, tile_rows) * tile_rows
        padded = rows * lanes

        # Pad-and-slice instead of a single giant unpipelined block for ragged
        # sizes: keeps the fast tiled, pipelined path for every input size.
        flat = x.reshape(-1)
        if padded != n:
            flat = jnp.pad(flat, (0, padded - n))
        x2d = flat.reshape(rows, lanes)

        y2d = _apply_lambda_2d(self.f, x2d, out_dtype, tile_rows)

        y = y2d.reshape(-1)
        if padded != n:
            y = y[:n]
        return y.reshape(x.shape)


if __name__ == "__main__":
    key = jax.random.PRNGKey(0)
    # NCHW input, small shapes: batch=2, channels=4, spatial=16x16.
    x = jax.random.normal(key, (2, 4, 16, 16), dtype=jnp.float32)

    # Example user function for the Lambda wrapper (deterministic, no params).
    f = lambda t: jnp.tanh(t) * 2.0 + 1.0

    module = Lambda(f)
    y = jax.block_until_ready(module(x))

    # Correctness check against the plain-JAX reference of forward(x) = f(x).
    y_ref = f(x)
    assert y.shape == x.shape and y.dtype == y_ref.dtype
    assert jnp.allclose(y, y_ref, atol=1e-6, rtol=1e-6)

    print("KERNEL_OK")
</pallas_src>

<mosaic_0001>
module attributes {stable_mosaic.version = 11 : i64} {
  func.func @kernel(%arg0: i32, %arg1: memref<8x512xf32, #tpu.memory_space<vmem>>, %arg2: memref<8x512xf32, #tpu.memory_space<vmem>>) attributes {dimension_semantics = [#tpu.dimension_semantics<parallel>], iteration_bounds = array<i64: 1>, scalar_prefetch = 0 : i64, scratch_operands = 0 : i64, tpu.core_type = #tpu.core_type<tc>, window_params = [{transform_indices = @transform_0, window_bounds = array<i64: 8, 512>}, {transform_indices = @transform_1, window_bounds = array<i64: 8, 512>}]} {
    %c0 = arith.constant 0 : index
    %c0_0 = arith.constant 0 : index
    %0 = vector.load %arg1[%c0, %c0_0] : memref<8x512xf32, #tpu.memory_space<vmem>>, vector<8x512xf32>
    %1 = math.tanh %0 : vector<8x512xf32>
    %cst = arith.constant 2.000000e+00 : f32
    %2 = vector.broadcast %cst : f32 to vector<8x512xf32>
    %3 = arith.mulf %1, %2 : vector<8x512xf32>
    %cst_1 = arith.constant 1.000000e+00 : f32
    %4 = vector.broadcast %cst_1 : f32 to vector<8x512xf32>
    %5 = arith.addf %3, %4 : vector<8x512xf32>
    %c0_2 = arith.constant 0 : index
    %c0_3 = arith.constant 0 : index
    %6 = vector.load %arg2[%c0_2, %c0_3] : memref<8x512xf32, #tpu.memory_space<vmem>>, vector<8x512xf32>
    tpu.vector_store %arg2[%c0_2, %c0_3], %5 {strides = array<i32>} : memref<8x512xf32, #tpu.memory_space<vmem>>, vector<8x512xf32>,
    return
  }
  func.func @transform_0(%arg0: i32) -> (i32, i32) {
    %c0_i32 = arith.constant 0 : i32
    %c0_i32_0 = arith.constant 0 : i32
    return %arg0, %c0_i32 : i32, i32
  }
  func.func @transform_1(%arg0: i32) -> (i32, i32) {
    %c0_i32 = arith.constant 0 : i32
    %c0_i32_0 = arith.constant 0 : i32
    return %arg0, %c0_i32 : i32, i32
  }
}

</mosaic_0001>

<llo_original>
// kernel: tpu_custom_call.1
$region0: #{tpu_custom_call.1}
  #allocation0 [shape = 'u32[]', space=smem, size = 0x4, offset = 0x4, fixed_abs, tag = 'smem constant byte address 0x4 - core index']
  #allocation1 [shape = 'u32[144,128]{1,0:T(1,128)}', space=vmem, size = 0x12000, scoped, tag = 'internal scratch']
  %s0 = inlined_call_operand.hbm [shape: f32[8,512], index: 0, kind: input, shape index: {}]
  %s1 = inlined_call_operand.hbm [shape: f32[8,512], index: 1, kind: output, shape index: {}]
  %s2 = sld [smem:[#allocation0]]
  $region18: #{tpu_custom_call.1} parent=0
    _
  %s4 = ssub.s32 1, %s2
  %s5 = scalar_select 0, %s4, %s2
  $region1: #{tpu_custom_call.1} parent=0
    #allocation2 [shape = 'u8[16384]{0}', space=vmem, size = 0x4000, scoped, tag = 'input window, operand 0, single buffered']
    #allocation3 [shape = 's32[1]{0}', space=sflag, size = 0x4, scoped, tag = 'scoped memory for tpu_custom_call.1']
    #allocation4 [shape = 's32[1]{0}', space=sflag, size = 0x4, scoped, tag = 'scoped memory for tpu_custom_call.1']
    #allocation5 [shape = 'u8[16384]{0}', space=vmem, size = 0x4000, scoped, tag = 'output window, operand 0, single buffered']
    %6 = vsyncpa [#allocation3], 0
    %7 = vsyncpa [#allocation4], 0
    // Predicated region
    $region2: #{tpu_custom_call.1} parent=1 // pred_check
      _
    $region3: #{tpu_custom_call.1} parent=1 // pred_check_branch
      %9 = sbr.rel (0) target = $region5
    $region4: #{tpu_custom_call.1} parent=1 // pred_region
      %s11 = ssub.s32 512, 512
      %12 = vsyncadd [#allocation3], %s11
      %s14 = sshll.u32 [#allocation2], 4
      %s15 = int_to_ptr.vmem [resolvable:$true] %s14
      %17 = dma.hbm_to_vmem [thread:$0]  %s0, 512, %s15, [#allocation3]
    $region5: #{tpu_custom_call.1} parent=1 // pred_fallthru
      _
    // Predicated region
    $region6: #{tpu_custom_call.1} parent=1 // pred_check
      _
    $region7: #{tpu_custom_call.1} parent=1 // pred_check_branch
      %19 = sbr.rel (0) target = $region9
    $region8: #{tpu_custom_call.1} parent=1 // pred_region
      %20 = dma.done [#allocation3], 512
    $region9: #{tpu_custom_call.1} parent=1 // pred_fallthru
      _
    %v21 = vld [vmem:[#allocation2] sm:$0xff]
    %v22 = vld [vmem:[#allocation2 + $0x8] sm:$0xff]
    %v23 = vld [vmem:[#allocation2 + $0x10] sm:$0xff]
    %v24 = vld [vmem:[#allocation2 + $0x18] sm:$0xff]
    %v25 = vtanh.pop %v21
    %v26 = vtanh.pop %v22
    %v27 = vtanh.pop %v23
    %v28 = vtanh.pop %v24
    %v29 = vmul.f32 %v25, 2.0
    %v30 = vmul.f32 %v26, 2.0
    %v31 = vmul.f32 %v27, 2.0
    %v32 = vmul.f32 %v28, 2.0
    %v33 = vadd.f32 %v29, 1.0
    %v34 = vadd.f32 %v30, 1.0
    %v35 = vadd.f32 %v31, 1.0
    %v36 = vadd.f32 %v32, 1.0
    %37 = vst [vmem:[#allocation5] sm:$0xff] %v33
    %38 = vst [vmem:[#allocation5 + $0x8] sm:$0xff] %v34
    %39 = vst [vmem:[#allocation5 + $0x10] sm:$0xff] %v35
    %40 = vst [vmem:[#allocation5 + $0x18] sm:$0xff] %v36
    // Predicated region
    $region10: #{tpu_custom_call.1} parent=1 // pred_check
      _
    $region11: #{tpu_custom_call.1} parent=1 // pred_check_branch
      %42 = sbr.rel (0) target = $region13
    $region12: #{tpu_custom_call.1} parent=1 // pred_region
      %s44 = ssub.s32 512, 512
      %45 = vsyncadd [#allocation4], %s44
      %s47 = sshll.u32 [#allocation5], 4
      %s48 = int_to_ptr.vmem [resolvable:$true] %s47
      %50 = dma.vmem_to_hbm [thread:$0]  %s48, 512, %s1, [#allocation4]
    $region13: #{tpu_custom_call.1} parent=1 // pred_fallthru
      _
    // Predicated region
    $region14: #{tpu_custom_call.1} parent=1 // pred_check
      _
    $region15: #{tpu_custom_call.1} parent=1 // pred_check_branch
      %52 = sbr.rel (0) target = $region17
    $region16: #{tpu_custom_call.1} parent=1 // pred_region
      %53 = dma.done [#allocation4], 512
    $region17: #{tpu_custom_call.1} parent=1 // pred_fallthru
      _
    %54 = vsyncpa [#allocation3], 1
    %55 = vsyncpa [#allocation4], 1

</llo_original>
